<compile_context>
chip_gen: v5e
topology: v5e:2x2
jax: 0.10.0
libtpu: 0.0.40
codegen_flags: <defaults>
</compile_context>

<pallas_src>
import functools
import math

import numpy as np
import jax
import jax.numpy as jnp
from jax.experimental import pallas as pl
from jax.experimental.pallas import tpu as pltpu


# ----------------------------------------------------------------------------
# pe table construction (exactly reproduces the PyTorch __init__ loop,
# including the tutorial's 2*(i+1)/d_model exponent on the cos term).
# ----------------------------------------------------------------------------
def build_pe_table(d_model: int, max_seq_len: int = 80) -> np.ndarray:
    if d_model % 2 != 0:
        # The PyTorch loop writes pe[pos, i + 1] and would IndexError too.
        raise ValueError(f"d_model must be even, got {d_model}")
    pe = np.zeros((max_seq_len, d_model), dtype=np.float32)
    for pos in range(max_seq_len):
        for i in range(0, d_model, 2):
            pe[pos, i] = math.sin(pos / 10000 ** (2 * i / d_model))
            pe[pos, i + 1] = math.cos(pos / 10000 ** (2 * (i + 1) / d_model))
    return pe  # (max_seq_len, d_model)


# ----------------------------------------------------------------------------
# Kernel: one tile of x per grid step; pe tile broadcast over the batch rows.
# Compute in f32 (VPU has huge slack), cast once on store.
# ----------------------------------------------------------------------------
def _pos_enc_kernel(x_ref, pe_ref, o_ref, *, scale):
    x = x_ref[...].astype(jnp.float32)
    o_ref[...] = (x * scale + pe_ref[...]).astype(o_ref.dtype)


# Per-buffer tile budget: x and out tiles are each double-buffered by the
# pipeline, so 2 arrays x 2 buffers x 2 MiB = 8 MiB (+ tiny pe) -- safe on
# every generation including v7x (64 MiB physical VMEM).
_MAX_TILE_BYTES = 2 * 1024 * 1024
_VMEM_LIMIT_BYTES = 32 * 1024 * 1024
# Minimum grid steps we aim for so in-DMA / compute / out-DMA overlap and the
# grid can shard across both TensorCores on v7x.
_MIN_GRID_STEPS = 8


def _sublane_pack(dtype) -> int:
    """Sublane packing factor: 8 for 32-bit, 16 for 16-bit, 32 for 8-bit."""
    itemsize = jnp.dtype(dtype).itemsize
    return {4: 8, 2: 16, 1: 32}.get(itemsize, 8)


def _pick_tiles_3d(B, S, D, itemsize, pack):
    """Pick (tb_b, tb_s) for a (tb_b, tb_s, D) tile: fits budget, >= MIN steps."""
    def tile_bytes(tb, ts):
        return tb * ts * D * itemsize

    def steps(tb, ts):
        return pl.cdiv(B, tb) * pl.cdiv(S, ts)

    tb_b, tb_s = B, S
    # Shrink the batch tile first: halves tile bytes / doubles steps without
    # touching the (sublane, lane) tile shape.
    while tb_b > 1 and (tile_bytes(tb_b, tb_s) > _MAX_TILE_BYTES
                        or steps(tb_b, tb_s) < _MIN_GRID_STEPS):
        tb_b = max(1, tb_b // 2)
    # Then shrink the seq tile, keeping it a multiple of the sublane pack.
    while tb_s > pack and (tile_bytes(tb_b, tb_s) > _MAX_TILE_BYTES
                           or steps(tb_b, tb_s) < _MIN_GRID_STEPS):
        tb_s = max(pack, -(-(tb_s // 2) // pack) * pack)
    return tb_b, tb_s


def _pick_row_tile(B, row_bytes, pack):
    """Row tile for the flattened (B, S*D) view: pack-aligned, budgeted."""
    tb = B
    while tb > pack and (tb * row_bytes > _MAX_TILE_BYTES
                         or pl.cdiv(B, tb) < _MIN_GRID_STEPS):
        tb = max(pack, -(-(tb // 2) // pack) * pack)
    return tb


def positional_encoder(
    x: jax.Array, pe_table: jax.Array, *, min_pallas_bytes: int = 1 << 20
) -> jax.Array:
    """x: (B, S, D);  pe_table: (max_seq_len, D) fp32.  Returns (B, S, D)."""
    B, S, D = x.shape
    max_seq_len, d_model = pe_table.shape
    if S > max_seq_len:
        raise ValueError(f"seq_len={S} exceeds max_seq_len={max_seq_len}")
    if D != d_model:
        raise ValueError(f"d_model mismatch: x has {D}, pe has {d_model}")

    scale = float(math.sqrt(D))
    pe_f32 = pe_table[:S].astype(jnp.float32)  # glue: slice like pe[:, :seq_len]

    # Tiny activations: pallas_call fixed overhead dwarfs the HBM traffic; let
    # XLA fuse the elementwise expression instead.
    if x.size * x.dtype.itemsize < min_pallas_bytes:
        return (x.astype(jnp.float32) * scale + pe_f32[None]).astype(x.dtype)

    itemsize = x.dtype.itemsize
    pack = _sublane_pack(x.dtype)
    kernel = functools.partial(_pos_enc_kernel, scale=scale)

    if D % 128 == 0:
        # D is already lane-dense: tile the 3-D array directly -> no external
        # reshape, no HBM relayout copies.
        tb_b, tb_s = _pick_tiles_3d(B, S, D, itemsize, pack)
        grid = (pl.cdiv(B, tb_b), pl.cdiv(S, tb_s))
        pe3 = pe_f32.reshape(1, S, D)  # tiny table, leading broadcast dim
        return pl.pallas_call(
            kernel,
            out_shape=jax.ShapeDtypeStruct((B, S, D), x.dtype),
            grid_spec=pltpu.PrefetchScalarGridSpec(
                num_scalar_prefetch=0,
                grid=grid,
                in_specs=[
                    pl.BlockSpec((tb_b, tb_s, D), lambda ib, is_: (ib, is_, 0)),
                    pl.BlockSpec((1, tb_s, D), lambda ib, is_: (0, is_, 0)),
                ],
                out_specs=pl.BlockSpec((tb_b, tb_s, D), lambda ib, is_: (ib, is_, 0)),
            ),
            compiler_params=pltpu.CompilerParams(
                dimension_semantics=("parallel", "parallel"),
                vmem_limit_bytes=_VMEM_LIMIT_BYTES,
            ),
        )(x, pe3)

    # D not lane-aligned (e.g. D < 128): flatten (S, D) so the lane dim is S*D,
    # recovering full-width stores; relayout cost is negligible at these sizes.
    cols = S * D
    x2 = x.reshape(B, cols)
    pe2 = pe_f32.reshape(1, cols)
    tb = _pick_row_tile(B, cols * itemsize, pack)
    grid = (pl.cdiv(B, tb),)
    out2 = pl.pallas_call(
        kernel,
        out_shape=jax.ShapeDtypeStruct((B, cols), x.dtype),
        grid_spec=pltpu.PrefetchScalarGridSpec(
            num_scalar_prefetch=0,
            grid=grid,
            in_specs=[
                pl.BlockSpec((tb, cols), lambda i: (i, 0)),   # x row-tile
                pl.BlockSpec((1, cols), lambda i: (0, 0)),    # pe row (grid-invariant)
            ],
            out_specs=pl.BlockSpec((tb, cols), lambda i: (i, 0)),
        ),
        compiler_params=pltpu.CompilerParams(
            dimension_semantics=("parallel",),
            vmem_limit_bytes=_VMEM_LIMIT_BYTES,
        ),
    )(x2, pe2)
    return out2.reshape(B, S, D)


if __name__ == "__main__":
    MAX_SEQ_LEN = 80
    key = jax.random.PRNGKey(0)
    k1, k2 = jax.random.split(key)

    # Case 1: tiny module-consistent shape (batch=2, seq=8, d_model=32).
    # D < 128 -> flattened lane-dense path.  min_pallas_bytes=0 so the Pallas
    # kernel (not the XLA fallback) is exercised.
    B, S, D = 2, 8, 32
    pe_tab = jnp.asarray(build_pe_table(D, MAX_SEQ_LEN))
    x = jax.random.normal(k1, (B, S, D), dtype=jnp.float32)
    out = jax.block_until_ready(positional_encoder(x, pe_tab, min_pallas_bytes=0))
    ref = x * math.sqrt(D) + pe_tab[None, :S, :]
    np.testing.assert_allclose(np.asarray(out), np.asarray(ref), rtol=1e-6, atol=1e-6)

    # Case 2: lane-dense d_model (D % 128 == 0) -> direct 3-D tiling path
    # (no reshape / relayout), still small shapes.
    B2, S2, D2 = 4, 16, 128
    pe_tab2 = jnp.asarray(build_pe_table(D2, MAX_SEQ_LEN))
    x2 = jax.random.normal(k2, (B2, S2, D2), dtype=jnp.float32)
    out2 = jax.block_until_ready(positional_encoder(x2, pe_tab2, min_pallas_bytes=0))
    ref2 = x2 * math.sqrt(D2) + pe_tab2[None, :S2, :]
    np.testing.assert_allclose(np.asarray(out2), np.asarray(ref2), rtol=1e-5, atol=1e-5)

    print("KERNEL_OK")
</pallas_src>

<mosaic_0001>
module attributes {stable_mosaic.version = 11 : i64} {
  func.func @_pos_enc_kernel(%arg0: i32, %arg1: memref<2x256xf32, #tpu.memory_space<vmem>>, %arg2: memref<1x256xf32, #tpu.memory_space<vmem>>, %arg3: memref<2x256xf32, #tpu.memory_space<vmem>>) attributes {dimension_semantics = [#tpu.dimension_semantics<parallel>], iteration_bounds = array<i64: 1>, scalar_prefetch = 0 : i64, scratch_operands = 0 : i64, tpu.core_type = #tpu.core_type<tc>, window_params = [{transform_indices = @transform_0, window_bounds = array<i64: 2, 256>}, {pipeline_mode = #tpu.pipeline_mode<synchronous>, transform_indices = @transform_1, window_bounds = array<i64: 1, 256>}, {transform_indices = @transform_2, window_bounds = array<i64: 2, 256>}]} {
    %c0 = arith.constant 0 : index
    %c0_0 = arith.constant 0 : index
    %0 = vector.load %arg1[%c0, %c0_0] : memref<2x256xf32, #tpu.memory_space<vmem>>, vector<2x256xf32>
    %cst = arith.constant 5.65685415 : f32
    %1 = vector.broadcast %cst : f32 to vector<2x256xf32>
    %2 = arith.mulf %0, %1 : vector<2x256xf32>
    %c0_1 = arith.constant 0 : index
    %c0_2 = arith.constant 0 : index
    %3 = vector.load %arg2[%c0_1, %c0_2] : memref<1x256xf32, #tpu.memory_space<vmem>>, vector<1x256xf32>
    %4 = vector.broadcast %3 : vector<1x256xf32> to vector<2x256xf32>
    %5 = arith.addf %2, %4 : vector<2x256xf32>
    %c0_3 = arith.constant 0 : index
    %c0_4 = arith.constant 0 : index
    %6 = vector.load %arg3[%c0_3, %c0_4] : memref<2x256xf32, #tpu.memory_space<vmem>>, vector<2x256xf32>
    tpu.vector_store %arg3[%c0_3, %c0_4], %5 {strides = array<i32>} : memref<2x256xf32, #tpu.memory_space<vmem>>, vector<2x256xf32>,
    return
  }
  func.func @transform_0(%arg0: i32) -> (i32, i32) {
    %c0_i32 = arith.constant 0 : i32
    %c0_i32_0 = arith.constant 0 : i32
    return %arg0, %c0_i32 : i32, i32
  }
  func.func @transform_1(%arg0: i32) -> (i32, i32) {
    %c0_i32 = arith.constant 0 : i32
    %c0_i32_0 = arith.constant 0 : i32
    %c0_i32_1 = arith.constant 0 : i32
    return %c0_i32, %c0_i32_0 : i32, i32
  }
  func.func @transform_2(%arg0: i32) -> (i32, i32) {
    %c0_i32 = arith.constant 0 : i32
    %c0_i32_0 = arith.constant 0 : i32
    return %arg0, %c0_i32 : i32, i32
  }
}

</mosaic_0001>

<llo_original>
// kernel: tpu_custom_call.1
$region0: #{tpu_custom_call.1}
  #allocation0 [shape = 'u32[]', space=smem, size = 0x4, offset = 0x4, fixed_abs, tag = 'smem constant byte address 0x4 - core index']
  #allocation1 [shape = 'u32[72,128]{1,0:T(1,128)}', space=vmem, size = 0x9000, scoped, tag = 'internal scratch']
  %s0 = inlined_call_operand.hbm [shape: f32[2,256], index: 0, kind: input, shape index: {}]
  %s1 = inlined_call_operand.hbm [shape: f32[1,256], index: 1, kind: input, shape index: {}]
  %s2 = inlined_call_operand.hbm [shape: f32[2,256], index: 2, kind: output, shape index: {}]
  %s3 = sld [smem:[#allocation0]]
  $region26: #{tpu_custom_call.1} parent=0
    _
  %s5 = ssub.s32 1, %s3
  %s6 = scalar_select 0, %s5, %s3
  $region1: #{tpu_custom_call.1} parent=0
    #allocation2 [shape = 'u8[2048]{0}', space=vmem, size = 0x800, scoped, tag = 'input window, operand 0, single buffered']
    #allocation3 [shape = 's32[1]{0}', space=sflag, size = 0x4, scoped, tag = 'scoped memory for tpu_custom_call.1']
    #allocation4 [shape = 's32[1]{0}', space=sflag, size = 0x4, scoped, tag = 'scoped memory for tpu_custom_call.1']
    #allocation5 [shape = 'u8[1024]{0}', space=vmem, size = 0x400, scoped, tag = 'input window, operand 1, single buffered']
    #allocation6 [shape = 's32[1]{0}', space=sflag, size = 0x4, scoped, tag = 'scoped memory for tpu_custom_call.1']
    #allocation7 [shape = 'u8[2048]{0}', space=vmem, size = 0x800, scoped, tag = 'output window, operand 0, single buffered']
    %7 = vsyncpa [#allocation3], 0
    %8 = vsyncpa [#allocation6], 0
    %9 = vsyncpa [#allocation4], 0
    // Predicated region
    $region2: #{tpu_custom_call.1} parent=1 // pred_check
      _
    $region3: #{tpu_custom_call.1} parent=1 // pred_check_branch
      %11 = sbr.rel (0) target = $region5
    $region4: #{tpu_custom_call.1} parent=1 // pred_region
      %13 = vsyncadd [#allocation3], 0
      %s15 = sshll.u32 %s0, 4
      %s16 = int_to_ptr.hbm [resolvable:$true] %s15
      %s17 = sshll.u32 [#allocation2], 4
      %s18 = int_to_ptr.vmem [resolvable:$true] %s17
      %20 = dma.hbm_to_vmem [thread:$0]  %s16, 64, %s18, [#allocation3]
    $region5: #{tpu_custom_call.1} parent=1 // pred_fallthru
      _
    // Predicated region
    $region6: #{tpu_custom_call.1} parent=1 // pred_check
      _
    $region7: #{tpu_custom_call.1} parent=1 // pred_check_branch
      %22 = sbr.rel (0) target = $region9
    $region8: #{tpu_custom_call.1} parent=1 // pred_region
      %24 = vsyncadd [#allocation6], 0
      %s26 = sshll.u32 %s1, 4
      %s27 = int_to_ptr.hbm [resolvable:$true] %s26
      %s28 = sshll.u32 [#allocation5], 4
      %s29 = int_to_ptr.vmem [resolvable:$true] %s28
      %31 = dma.hbm_to_vmem [thread:$0]  %s27, 32, %s29, [#allocation6]
    $region9: #{tpu_custom_call.1} parent=1 // pred_fallthru
      _
    // Predicated region
    $region10: #{tpu_custom_call.1} parent=1 // pred_check
      _
    $region11: #{tpu_custom_call.1} parent=1 // pred_check_branch
      %33 = sbr.rel (0) target = $region13
    $region12: #{tpu_custom_call.1} parent=1 // pred_region
      %35 = dma.done [#allocation3], 64
    $region13: #{tpu_custom_call.1} parent=1 // pred_fallthru
      _
    // Predicated region
    $region14: #{tpu_custom_call.1} parent=1 // pred_check
      _
    $region15: #{tpu_custom_call.1} parent=1 // pred_check_branch
      %37 = sbr.rel (0) target = $region17
    $region16: #{tpu_custom_call.1} parent=1 // pred_region
      %39 = dma.done [#allocation6], 32
    $region17: #{tpu_custom_call.1} parent=1 // pred_fallthru
      _
    %v40 = vld [vmem:[#allocation2] sm:$0xf]
    %v41 = vmul.f32 %v40, 5.656854
    %v42 = vld [vmem:[#allocation5] sm:$0x3]
    %v44 = vperm.slane %v42, 0
    %v45 = vperm.slane %v42, 1
    %v46 = vrot.slane %v45, 6
    %vm47 = vcmask 1041408
    %v48 = vsel %vm47, %v44, %v46
    %v50 = vadd.f32 %v41, %v48
    %51 = vst [vmem:[#allocation7] sm:$0xf] %v50
    // Predicated region
    $region18: #{tpu_custom_call.1} parent=1 // pred_check
      _
    $region19: #{tpu_custom_call.1} parent=1 // pred_check_branch
      %53 = sbr.rel (0) target = $region21
    $region20: #{tpu_custom_call.1} parent=1 // pred_region
      %55 = vsyncadd [#allocation4], 0
      %s57 = sshll.u32 [#allocation7], 4
      %s58 = int_to_ptr.vmem [resolvable:$true] %s57
      %s59 = sshll.u32 %s2, 4
      %s60 = int_to_ptr.hbm [resolvable:$true] %s59
      %62 = dma.vmem_to_hbm [thread:$0]  %s58, 64, %s60, [#allocation4]
    $region21: #{tpu_custom_call.1} parent=1 // pred_fallthru
      _
    // Predicated region
    $region22: #{tpu_custom_call.1} parent=1 // pred_check
      _
    $region23: #{tpu_custom_call.1} parent=1 // pred_check_branch
      %64 = sbr.rel (0) target = $region25
    $region24: #{tpu_custom_call.1} parent=1 // pred_region
      %66 = dma.done [#allocation4], 64
    $region25: #{tpu_custom_call.1} parent=1 // pred_fallthru
      _
    %67 = vsyncpa [#allocation3], 1
    %68 = vsyncpa [#allocation6], 1
    %69 = vsyncpa [#allocation4], 1

</llo_original>
